<compile_context>
chip_gen: v7x
topology: tpu7x:2x2x1
jax: 0.10.0
libtpu: 0.0.40
codegen_flags: <defaults>
</compile_context>

<pallas_src>
import functools

import jax
import jax.numpy as jnp
from jax.experimental import pallas as pl
from jax.experimental.pallas import tpu as pltpu

EPS = 1e-5
LANE = 128
# Explicit scoped-VMEM budget: above v5e's 16 MiB default, well under v7x's 64 MiB
# physical per-TensorCore VMEM.
VMEM_LIMIT = 32 * 1024 * 1024


def _round_up(x, m):
    return (x + m - 1) // m * m


# ---------- Pass 1: W @ patches^T (bf16 MXU, f32 acc) + per-tile BN partial stats ----
def _matmul_stats_kernel(w_ref, p_ref, y_ref, sum_ref, sq_ref):
    # w_ref: (Cp, Kpad) bf16 ; p_ref: (Kpad, TILE_P) bf16
    y = jnp.dot(w_ref[...], p_ref[...], preferred_element_type=jnp.float32)
    y_ref[...] = y.astype(y_ref.dtype)                       # bf16 store, true size
    # f32 stats from the f32 accumulator; padded P columns are all-zero patches so
    # they contribute exactly 0 (no fixup needed in the glue).
    sum_ref[...] = jnp.sum(y, axis=1, keepdims=True)[None, :, :]      # (1, Cp, 1)
    sq_ref[...] = jnp.sum(y * y, axis=1, keepdims=True)[None, :, :]   # (1, Cp, 1)


# ---------- Pass 2: normalize + affine + ReLU (true-size, lane-dense) ----------------
def _bn_relu_kernel(y_ref, scale_ref, shift_ref, o_ref):
    y = y_ref[...].astype(jnp.float32)
    o_ref[...] = jnp.maximum(y * scale_ref[...] + shift_ref[...], 0.0)


def _im2col_3d_T(x_pad, k, s):
    # x_pad: (C, N, Dp, Hp, Wp), batch-minor, already zero-padded (bf16).
    C, N, Dp, Hp, Wp = x_pad.shape
    Do = (Dp - k) // s + 1
    Ho = (Hp - k) // s + 1
    Wo = (Wp - k) // s + 1
    slabs = []
    for kd in range(k):
        for kh in range(k):
            for kw in range(k):
                sl = x_pad[:, :,
                           kd:kd + s * (Do - 1) + 1:s,
                           kh:kh + s * (Ho - 1) + 1:s,
                           kw:kw + s * (Wo - 1) + 1:s]
                slabs.append(sl)                              # (C, N, Do, Ho, Wo)
    p = jnp.stack(slabs, axis=1)                              # (C, k^3, N, Do, Ho, Wo)
    # K order = (Cin, kd, kh, kw), matching weight.reshape(Cout, Cin*k^3); the reshape
    # below is layout-preserving (no expanded-matrix transpose).
    return p.reshape(C * k * k * k, N * Do * Ho * Wo), (N, Do, Ho, Wo)


@functools.partial(jax.jit, static_argnames=("kernel", "stride", "tile_p"))
def up_conv_forward(x, weight, bias, gamma, beta, *, kernel, stride, tile_p=4096):
    """x: (N, C_in, D, H, W); weight: (C_out, C_in, k, k, k) [PyTorch layouts].

    NOTE: `bias` is accepted for API parity but is mathematically cancelled by the
    training-mode BatchNorm that immediately follows the conv (it shifts the batch
    mean by exactly itself), so it never needs to be added.
    """
    N, Cin, D, H, W = x.shape
    Cout = weight.shape[0]
    k, s = kernel, stride
    pad = k // 2

    # --- glue: bf16, batch-minor, nearest x2 upsample, zero pad, transposed im2col ---
    xb = x.astype(jnp.bfloat16).transpose(1, 0, 2, 3, 4)      # (C, N, D, H, W), small
    xu = jnp.repeat(jnp.repeat(jnp.repeat(xb, 2, axis=2), 2, axis=3), 2, axis=4)
    xp = jnp.pad(xu, ((0, 0), (0, 0), (pad, pad), (pad, pad), (pad, pad)))
    patches_t, (n, Do, Ho, Wo) = _im2col_3d_T(xp, k, s)       # (K, P) bf16
    K, P = patches_t.shape

    # --- pad to TPU-friendly sizes (sublanes multiple of 8, lanes multiple of 128) ---
    Kpad = _round_up(K, LANE)            # contraction dim
    Cp = _round_up(Cout, 8)              # channel dim keeps its true (sublane) size
    # Big tiles for HBM roofline, but keep >= 2 grid tiles when P allows so the
    # 'parallel' axis can shard across v7x's two TensorCores.
    TILE_P = min(tile_p, _round_up(max(-(-P // 2), 256), 256))
    P_pad = _round_up(P, TILE_P)
    num_tiles = P_pad // TILE_P

    patches_t = jnp.pad(patches_t, ((0, Kpad - K), (0, P_pad - P)))
    w2d = jnp.pad(weight.reshape(Cout, Cin * k * k * k).astype(jnp.bfloat16),
                  ((0, Cp - Cout), (0, Kpad - K)))            # (Cp, Kpad)

    flops1 = 2 * Cp * Kpad * P_pad
    bytes1 = (Kpad * P_pad * 2 + Cp * Kpad * 2 + Cp * P_pad * 2
              + 2 * num_tiles * Cp * 4)

    # --- Pass 1: tiled matmul + per-tile BN partial sums ---
    yt, psum, psq = pl.pallas_call(
        _matmul_stats_kernel,
        grid=(num_tiles,),
        in_specs=[
            pl.BlockSpec((Cp, Kpad), lambda i: (0, 0)),       # weights stay resident
            pl.BlockSpec((Kpad, TILE_P), lambda i: (0, i)),
        ],
        out_specs=(
            pl.BlockSpec((Cp, TILE_P), lambda i: (0, i)),
            pl.BlockSpec((1, Cp, 1), lambda i: (i, 0, 0)),
            pl.BlockSpec((1, Cp, 1), lambda i: (i, 0, 0)),
        ),
        out_shape=(
            jax.ShapeDtypeStruct((Cp, P_pad), jnp.bfloat16),
            jax.ShapeDtypeStruct((num_tiles, Cp, 1), jnp.float32),
            jax.ShapeDtypeStruct((num_tiles, Cp, 1), jnp.float32),
        ),
        compiler_params=pltpu.CompilerParams(
            dimension_semantics=("parallel",), vmem_limit_bytes=VMEM_LIMIT),
        cost_estimate=pl.CostEstimate(flops=flops1, transcendentals=0,
                                      bytes_accessed=bytes1),
    )(w2d, patches_t)

    # --- glue: global BatchNorm3d (training-mode) statistics in f32 ---
    total_sum = jnp.sum(psum[:, :, 0], axis=0)                # (Cp,)
    total_sq = jnp.sum(psq[:, :, 0], axis=0)
    mean = total_sum / jnp.float32(P)                         # bias-free mean
    var = jnp.maximum(total_sq / jnp.float32(P) - mean * mean, 0.0)

    g = jnp.pad(gamma.astype(jnp.float32), (0, Cp - Cout))
    b = jnp.pad(beta.astype(jnp.float32), (0, Cp - Cout))
    inv = jax.lax.rsqrt(var + EPS)
    scale = (g * inv).reshape(Cp, 1)
    shift = (b - mean * g * inv).reshape(Cp, 1)               # conv bias cancels here

    # --- Pass 2: normalize + affine + ReLU on the true-size bf16 intermediate ---
    out_t = pl.pallas_call(
        _bn_relu_kernel,
        grid=(num_tiles,),
        in_specs=[
            pl.BlockSpec((Cp, TILE_P), lambda i: (0, i)),
            pl.BlockSpec((Cp, 1), lambda i: (0, 0)),
            pl.BlockSpec((Cp, 1), lambda i: (0, 0)),
        ],
        out_specs=pl.BlockSpec((Cp, TILE_P), lambda i: (0, i)),
        out_shape=jax.ShapeDtypeStruct((Cp, P_pad), jnp.float32),
        compiler_params=pltpu.CompilerParams(
            dimension_semantics=("parallel",), vmem_limit_bytes=VMEM_LIMIT),
        cost_estimate=pl.CostEstimate(
            flops=2 * Cp * P_pad, transcendentals=0,
            bytes_accessed=Cp * P_pad * (2 + 4) + 2 * Cp * 4),
    )(yt, scale, shift)

    # --- glue: drop padding, back to NCDHW (true-output-size permute only) ---
    out = out_t[:Cout, :P].reshape(Cout, n, Do, Ho, Wo).transpose(1, 0, 2, 3, 4)
    return out


def _reference(x, weight, bias, gamma, beta, kernel, stride):
    """Pure-JAX f32 reference matching PyTorch up_conv forward (training-mode BN)."""
    pad = kernel // 2
    xu = jnp.repeat(jnp.repeat(jnp.repeat(x, 2, axis=2), 2, axis=3), 2, axis=4)
    y = jax.lax.conv_general_dilated(
        xu, weight, window_strides=(stride,) * 3,
        padding=[(pad, pad)] * 3,
        dimension_numbers=("NCDHW", "OIDHW", "NCDHW"),
    ) + bias.reshape(1, -1, 1, 1, 1)
    mean = jnp.mean(y, axis=(0, 2, 3, 4), keepdims=True)
    var = jnp.mean((y - mean) ** 2, axis=(0, 2, 3, 4), keepdims=True)
    yn = (y - mean) * jax.lax.rsqrt(var + EPS)
    yn = yn * gamma.reshape(1, -1, 1, 1, 1) + beta.reshape(1, -1, 1, 1, 1)
    return jnp.maximum(yn, 0.0)


if __name__ == "__main__":
    # Small shapes consistent with the module: batch=2, in_c=4, out_c=8,
    # spatial 4^3 (upsampled to 8^3), kernel=3, stride=1.
    N, IN_C, OUT_C = 2, 4, 8
    D = H = W = 4
    KERNEL, STRIDE = 3, 1

    key = jax.random.PRNGKey(0)
    kx, kw, kb = jax.random.split(key, 3)
    x = jax.random.normal(kx, (N, IN_C, D, H, W), dtype=jnp.float32)
    weight = 0.1 * jax.random.normal(
        kw, (OUT_C, IN_C, KERNEL, KERNEL, KERNEL), dtype=jnp.float32)
    bias = 0.1 * jax.random.normal(kb, (OUT_C,), dtype=jnp.float32)
    gamma = jnp.ones((OUT_C,), dtype=jnp.float32)   # BatchNorm3d default init
    beta = jnp.zeros((OUT_C,), dtype=jnp.float32)

    out = up_conv_forward(x, weight, bias, gamma, beta,
                          kernel=KERNEL, stride=STRIDE)
    out = jax.block_until_ready(out)

    ref = _reference(x, weight, bias, gamma, beta, KERNEL, STRIDE)
    assert out.shape == ref.shape == (N, OUT_C, 2 * D, 2 * H, 2 * W), out.shape
    # bf16 matmul inputs + bf16 y intermediate (f32 accumulation / f32 BN stats)
    assert jnp.allclose(out, ref, atol=2e-2, rtol=2e-2), "mismatch vs reference"

    print("KERNEL_OK")
</pallas_src>

<mosaic_0001>
module attributes {stable_mosaic.version = 11 : i64} {
  func.func @_matmul_stats_kernel(%arg0: i32, %arg1: memref<8x128xbf16, #tpu.memory_space<vmem>>, %arg2: memref<128x512xbf16, #tpu.memory_space<vmem>>, %arg3: memref<8x512xbf16, #tpu.memory_space<vmem>>, %arg4: memref<1x8x1xf32, #tpu.memory_space<vmem>>, %arg5: memref<1x8x1xf32, #tpu.memory_space<vmem>>) attributes {dimension_semantics = [#tpu.dimension_semantics<parallel>], iteration_bounds = array<i64: 2>, scalar_prefetch = 0 : i64, scratch_operands = 0 : i64, tpu.core_type = #tpu.core_type<tc>, window_params = [{pipeline_mode = #tpu.pipeline_mode<synchronous>, transform_indices = @transform_0, window_bounds = array<i64: 8, 128>}, {transform_indices = @transform_1, window_bounds = array<i64: 128, 512>}, {transform_indices = @transform_2, window_bounds = array<i64: 8, 512>}, {transform_indices = @transform_3, window_bounds = array<i64: 1, 8, 1>}, {transform_indices = @transform_4, window_bounds = array<i64: 1, 8, 1>}]} {
    %c0 = arith.constant 0 : index
    %c0_0 = arith.constant 0 : index
    %0 = vector.load %arg1[%c0, %c0_0] : memref<8x128xbf16, #tpu.memory_space<vmem>>, vector<8x128xbf16>
    %c0_1 = arith.constant 0 : index
    %c0_2 = arith.constant 0 : index
    %1 = vector.load %arg2[%c0_1, %c0_2] : memref<128x512xbf16, #tpu.memory_space<vmem>>, vector<128x512xbf16>
    %cst = arith.constant dense<0.000000e+00> : vector<8x512xf32>
    %2 = tpu.matmul %0, %1, %cst {dimension_numbers = #tpu.dot_dimension_numbers<[1], [0], [0], [1], [0, 0, 1, 1], [], []>} : vector<8x128xbf16>, vector<128x512xbf16>, vector<8x512xf32> -> vector<8x512xf32>
    %3 = arith.truncf %2 : vector<8x512xf32> to vector<8x512xbf16>
    %c0_3 = arith.constant 0 : index
    %c0_4 = arith.constant 0 : index
    %4 = vector.load %arg3[%c0_3, %c0_4] : memref<8x512xbf16, #tpu.memory_space<vmem>>, vector<8x512xbf16>
    tpu.vector_store %arg3[%c0_3, %c0_4], %3 {strides = array<i32>} : memref<8x512xbf16, #tpu.memory_space<vmem>>, vector<8x512xbf16>,
    %cst_5 = arith.constant dense<0.000000e+00> : vector<8xf32>
    %5 = vector.multi_reduction <add>, %2, %cst_5 [1] : vector<8x512xf32> to vector<8xf32>
    %6 = vector.shape_cast %5 : vector<8xf32> to vector<8x1xf32>
    %7 = vector.shape_cast %6 : vector<8x1xf32> to vector<1x8x1xf32>
    %c0_6 = arith.constant 0 : index
    %c0_7 = arith.constant 0 : index
    %c0_8 = arith.constant 0 : index
    %8 = vector.load %arg4[%c0_6, %c0_7, %c0_8] : memref<1x8x1xf32, #tpu.memory_space<vmem>>, vector<1x8x1xf32>
    tpu.vector_store %arg4[%c0_6, %c0_7, %c0_8], %7 {strides = array<i32>} : memref<1x8x1xf32, #tpu.memory_space<vmem>>, vector<1x8x1xf32>,
    %9 = arith.mulf %2, %2 : vector<8x512xf32>
    %cst_9 = arith.constant dense<0.000000e+00> : vector<8xf32>
    %10 = vector.multi_reduction <add>, %9, %cst_9 [1] : vector<8x512xf32> to vector<8xf32>
    %11 = vector.shape_cast %10 : vector<8xf32> to vector<8x1xf32>
    %12 = vector.shape_cast %11 : vector<8x1xf32> to vector<1x8x1xf32>
    %c0_10 = arith.constant 0 : index
    %c0_11 = arith.constant 0 : index
    %c0_12 = arith.constant 0 : index
    %13 = vector.load %arg5[%c0_10, %c0_11, %c0_12] : memref<1x8x1xf32, #tpu.memory_space<vmem>>, vector<1x8x1xf32>
    tpu.vector_store %arg5[%c0_10, %c0_11, %c0_12], %12 {strides = array<i32>} : memref<1x8x1xf32, #tpu.memory_space<vmem>>, vector<1x8x1xf32>,
    return
  }
  func.func @transform_0(%arg0: i32) -> (i32, i32) {
    %c0_i32 = arith.constant 0 : i32
    %c0_i32_0 = arith.constant 0 : i32
    %c0_i32_1 = arith.constant 0 : i32
    return %c0_i32, %c0_i32_0 : i32, i32
  }
  func.func @transform_1(%arg0: i32) -> (i32, i32) {
    %c0_i32 = arith.constant 0 : i32
    %c0_i32_0 = arith.constant 0 : i32
    return %c0_i32, %arg0 : i32, i32
  }
  func.func @transform_2(%arg0: i32) -> (i32, i32) {
    %c0_i32 = arith.constant 0 : i32
    %c0_i32_0 = arith.constant 0 : i32
    return %c0_i32, %arg0 : i32, i32
  }
  func.func @transform_3(%arg0: i32) -> (i32, i32, i32) {
    %c0_i32 = arith.constant 0 : i32
    %c0_i32_0 = arith.constant 0 : i32
    %c0_i32_1 = arith.constant 0 : i32
    return %arg0, %c0_i32, %c0_i32_0 : i32, i32, i32
  }
  func.func @transform_4(%arg0: i32) -> (i32, i32, i32) {
    %c0_i32 = arith.constant 0 : i32
    %c0_i32_0 = arith.constant 0 : i32
    %c0_i32_1 = arith.constant 0 : i32
    return %arg0, %c0_i32, %c0_i32_0 : i32, i32, i32
  }
}

module attributes {stable_mosaic.version = 11 : i64} {
  func.func @_bn_relu_kernel(%arg0: i32, %arg1: memref<8x512xbf16, #tpu.memory_space<vmem>>, %arg2: memref<8x1xf32, #tpu.memory_space<vmem>>, %arg3: memref<8x1xf32, #tpu.memory_space<vmem>>, %arg4: memref<8x512xf32, #tpu.memory_space<vmem>>) attributes {dimension_semantics = [#tpu.dimension_semantics<parallel>], iteration_bounds = array<i64: 2>, scalar_prefetch = 0 : i64, scratch_operands = 0 : i64, tpu.core_type = #tpu.core_type<tc>, window_params = [{transform_indices = @transform_0, window_bounds = array<i64: 8, 512>}, {pipeline_mode = #tpu.pipeline_mode<synchronous>, transform_indices = @transform_1, window_bounds = array<i64: 8, 1>}, {pipeline_mode = #tpu.pipeline_mode<synchronous>, transform_indices = @transform_2, window_bounds = array<i64: 8, 1>}, {transform_indices = @transform_3, window_bounds = array<i64: 8, 512>}]} {
    %c0 = arith.constant 0 : index
    %c0_0 = arith.constant 0 : index
    %0 = vector.load %arg1[%c0, %c0_0] : memref<8x512xbf16, #tpu.memory_space<vmem>>, vector<8x512xbf16>
    %1 = arith.extf %0 : vector<8x512xbf16> to vector<8x512xf32>
    %c0_1 = arith.constant 0 : index
    %c0_2 = arith.constant 0 : index
    %2 = vector.load %arg2[%c0_1, %c0_2] : memref<8x1xf32, #tpu.memory_space<vmem>>, vector<8x1xf32>
    %3 = vector.broadcast %2 : vector<8x1xf32> to vector<8x512xf32>
    %4 = arith.mulf %1, %3 : vector<8x512xf32>
    %c0_3 = arith.constant 0 : index
    %c0_4 = arith.constant 0 : index
    %5 = vector.load %arg3[%c0_3, %c0_4] : memref<8x1xf32, #tpu.memory_space<vmem>>, vector<8x1xf32>
    %6 = vector.broadcast %5 : vector<8x1xf32> to vector<8x512xf32>
    %7 = arith.addf %4, %6 : vector<8x512xf32>
    %cst = arith.constant 0.000000e+00 : f32
    %8 = vector.broadcast %cst : f32 to vector<8x512xf32>
    %9 = arith.maximumf %7, %8 : vector<8x512xf32>
    %c0_5 = arith.constant 0 : index
    %c0_6 = arith.constant 0 : index
    %10 = vector.load %arg4[%c0_5, %c0_6] : memref<8x512xf32, #tpu.memory_space<vmem>>, vector<8x512xf32>
    tpu.vector_store %arg4[%c0_5, %c0_6], %9 {strides = array<i32>} : memref<8x512xf32, #tpu.memory_space<vmem>>, vector<8x512xf32>,
    return
  }
  func.func @transform_0(%arg0: i32) -> (i32, i32) {
    %c0_i32 = arith.constant 0 : i32
    %c0_i32_0 = arith.constant 0 : i32
    return %c0_i32, %arg0 : i32, i32
  }
  func.func @transform_1(%arg0: i32) -> (i32, i32) {
    %c0_i32 = arith.constant 0 : i32
    %c0_i32_0 = arith.constant 0 : i32
    %c0_i32_1 = arith.constant 0 : i32
    return %c0_i32, %c0_i32_0 : i32, i32
  }
  func.func @transform_2(%arg0: i32) -> (i32, i32) {
    %c0_i32 = arith.constant 0 : i32
    %c0_i32_0 = arith.constant 0 : i32
    %c0_i32_1 = arith.constant 0 : i32
    return %c0_i32, %c0_i32_0 : i32, i32
  }
  func.func @transform_3(%arg0: i32) -> (i32, i32) {
    %c0_i32 = arith.constant 0 : i32
    %c0_i32_0 = arith.constant 0 : i32
    return %c0_i32, %arg0 : i32, i32
  }
}

</mosaic_0001>

<llo_original>
// kernel: up_conv_forward.2
$region0: #{up_conv_forward.2}
  #allocation0 [shape = 'u32[]', space=smem, size = 0x4, offset = 0x4, fixed_abs, tag = 'smem constant byte address 0x4 - core index']
  #allocation1 [shape = 'u32[144,128]{1,0:T(1,128)}', space=vmem, size = 0x12000, scoped, tag = 'internal scratch']
  %s0 = inlined_call_operand.vmem [shape: bf16[8,128], index: 0, kind: input, shape index: {}]
  %s1 = inlined_call_operand.vmem [shape: bf16[128,1024], index: 1, kind: input, shape index: {}]
  %s2 = inlined_call_operand.vmem [shape: bf16[8,1024], index: 2, kind: output, shape index: {0}]
  %s3 = inlined_call_operand.vmem [shape: f32[2,8,1], index: 3, kind: output, shape index: {1}]
  %s4 = inlined_call_operand.vmem [shape: f32[2,8,1], index: 4, kind: output, shape index: {2}]
  %5 = xla_tuple %s2, %s3, %s4
  %s6 = sld [smem:[#allocation0]]
  $region80: #{up_conv_forward.2} parent=0
    _
  %s8 = ssub.s32 1, %s6
  %s9 = scalar_select 0, %s8, %s6
  $region1: #{up_conv_forward.2} parent=0
    #allocation2 [shape = 'u8[262144]{0}', space=vmem, size = 0x40000, scoped, tag = 'input window, operand 1']
    loop: start=0, step=1, limit=4
    $region2: #{up_conv_forward.2} parent=1 // loop_pre_header
      _
    $region3: #{up_conv_forward.2} parent=1 // loop_header
      %s11 = sphi 0, %s15
      %p12 = scmp.ge.s32.totalorder %s11, 4
      %s19 = sphi 0, %s19
      %s21 = sphi 0, %s19
      %s22 = sphi 0, %s21
      %s36 = sphi 0, %s22
      %s42 = sphi 0, %s44
      %s45 = sphi 0, %s42
      %s46 = sphi 0, %s45
      %s62 = sphi 0, %s46
      %s68 = sphi 0, %s70
      %s71 = sphi 0, %s68
      %s72 = sphi 0, %s71
      %s88 = sphi 0, %s72
      %s94 = sphi 0, %s96
      %s97 = sphi 0, %s94
      %s98 = sphi 0, %s97
      %s114 = sphi 0, %s98
      %s120 = sphi 0, %s122
      %s123 = sphi 0, %s120
      %s124 = sphi 0, %s123
      %s140 = sphi 0, %s124
    $region4: #{up_conv_forward.2} parent=1 // loop_header_branch
      %14 = sbr.rel (%p12) target = $region8
    $region5: #{up_conv_forward.2} parent=1 // loop_body
      %s16 = ssub.s32 %s11, 1
      %s17 = ssub.s32 %s11, 2
      %s18 = sadd.s32 %s11, 1
      %s20 = sadd.s32 %s19, 1
      %p23 = scmp.eq.s32.totalorder %s11, 1
      %p24 = scmp.ne.s32.totalorder %s19, %s21
      %p25 = scmp.eq.s32.totalorder %s11, 0
      %p26 = por %p24, %p25
      %p27 = scmp.ne.s32.totalorder %s19, %s21
      %p28 = scmp.eq.s32.totalorder %s16, 1
      %p29 = por %p27, %p28
      %p30 = scmp.ne.s32.totalorder %s21, %s22
      %p31 = scmp.eq.s32.totalorder %s16, 0
      %p32 = por %p30, %p31
      %p33 = scmp.ne.s32.totalorder %s21, %s22
      %p34 = scmp.eq.s32.totalorder %s17, 1
      %p35 = por %p33, %p34
      %p37 = scmp.ne.s32.totalorder %s22, %s36
      %p38 = scmp.eq.s32.totalorder %s17, 0
      %p39 = por %p37, %p38
      %s40 = ssub.s32 %s11, %s18
      %p41 = scmp.eq.s32.totalorder %s40, 0
      %s43 = sadd.s32 %s42, 1
      %s44 = scalar_select %p41, %s42, %s43
      %p47 = pneg %p41
      %p48 = scmp.eq.s32.totalorder %s11, 1
      %p49 = por %p47, %p48
      %p50 = scmp.ne.s32.totalorder %s42, %s45
      %p51 = scmp.eq.s32.totalorder %s11, 0
      %p52 = por %p50, %p51
      %p53 = scmp.ne.s32.totalorder %s42, %s45
      %p54 = scmp.eq.s32.totalorder %s16, 1
      %p55 = por %p53, %p54
      %p56 = scmp.ne.s32.totalorder %s45, %s46
      %p57 = scmp.eq.s32.totalorder %s16, 0
      %p58 = por %p56, %p57
      %p59 = scmp.ne.s32.totalorder %s45, %s46
      %p60 = scmp.eq.s32.totalorder %s17, 1
      %p61 = por %p59, %p60
      %p63 = scmp.ne.s32.totalorder %s46, %s62
      %p64 = scmp.eq.s32.totalorder %s17, 0
      %p65 = por %p63, %p64
      %s66 = ssub.s32 %s11, %s18
      %p67 = scmp.eq.s32.totalorder %s66, 0
      %s69 = sadd.s32 %s68, 1
      %s70 = scalar_select %p67, %s68, %s69
      %p73 = pneg %p67
      %p74 = scmp.eq.s32.totalorder %s11, 1
      %p75 = por %p73, %p74
      %p76 = scmp.ne.s32.totalorder %s68, %s71
      %p77 = scmp.eq.s32.totalorder %s11, 0
      %p78 = por %p76, %p77
      %p79 = scmp.ne.s32.totalorder %s68, %s71
      %p80 = scmp.eq.s32.totalorder %s16, 1
      %p81 = por %p79, %p80
      %p82 = scmp.ne.s32.totalorder %s71, %s72
      %p83 = scmp.eq.s32.totalorder %s16, 0
      %p84 = por %p82, %p83
      %p85 = scmp.ne.s32.totalorder %s71, %s72
      %p86 = scmp.eq.s32.totalorder %s17, 1
      %p87 = por %p85, %p86
      %p89 = scmp.ne.s32.totalorder %s72, %s88
      %p90 = scmp.eq.s32.totalorder %s17, 0
      %p91 = por %p89, %p90
      %s92 = ssub.s32 %s11, %s18
      %p93 = scmp.eq.s32.totalorder %s92, 0
      %s95 = sadd.s32 %s94, 1
      %s96 = scalar_select %p93, %s94, %s95
      %p99 = pneg %p93
      %p100 = scmp.eq.s32.totalorder %s11, 1
      %p101 = por %p99, %p100
      %p102 = scmp.ne.s32.totalorder %s94, %s97
      %p103 = scmp.eq.s32.totalorder %s11, 0
      %p104 = por %p102, %p103
      %p105 = scmp.ne.s32.totalorder %s94, %s97
      %p106 = scmp.eq.s32.totalorder %s16, 1
      %p107 = por %p105, %p106
      %p108 = scmp.ne.s32.totalorder %s97, %s98
      %p109 = scmp.eq.s32.totalorder %s16, 0
      %p110 = por %p108, %p109
      %p111 = scmp.ne.s32.totalorder %s97, %s98
      %p112 = scmp.eq.s32.totalorder %s17, 1
      %p113 = por %p111, %p112
      %p115 = scmp.ne.s32.totalorder %s98, %s114
      %p116 = scmp.eq.s32.totalorder %s17, 0
      %p117 = por %p115, %p116
      %s118 = ssub.s32 %s11, %s18
      %p119 = scmp.eq.s32.totalorder %s118, 0
      %s121 = sadd.s32 %s120, 1
      %s122 = scalar_select %p119, %s120, %s121
      %p125 = pneg %p119
      %p126 = scmp.eq.s32.totalorder %s11, 1
      %p127 = por %p125, %p126
      %p128 = scmp.ne.s32.totalorder %s120, %s123
      %p129 = scmp.eq.s32.totalorder %s11, 0
      %p130 = por %p128, %p129
      %p131 = scmp.ne.s32.totalorder %s120, %s123
      %p132 = scmp.eq.s32.totalorder %s16, 1
      %p133 = por %p131, %p132
      %p134 = scmp.ne.s32.totalorder %s123, %s124
      %p135 = scmp.eq.s32.totalorder %s16, 0
      %p136 = por %p134, %p135
      %p137 = scmp.ne.s32.totalorder %s123, %s124
      %p138 = scmp.eq.s32.totalorder %s17, 1
      %p139 = por %p137, %p138
      %p141 = scmp.ne.s32.totalorder %s124, %s140
      %p142 = scmp.eq.s32.totalorder %s17, 0
      %p143 = por %p141, %p142
      %p144 = scmp.le.s32.totalorder 1, %s11
      %p145 = scmp.lt.s32.totalorder %s11, 3
      %p146 = pnand %p144, %p145
      %p147 = pneg %p146
      // Predicated region
      $region9: #{up_conv_forward.2} parent=5 // pred_check
        _
      $region10: #{up_conv_forward.2} parent=5 // pred_check_branch
        %149 = sbr.rel (%p146) target = $region12
      $region11: #{up_conv_forward.2} parent=5 // pred_region
        %s150 = ssub.s32 %s11, 1
        // Predicated region
        $region13: #{up_conv_forward.2} parent=11 // pred_check
          %p151 = pneg %p32
        $region14: #{up_conv_forward.2} parent=11 // pred_check_branch
          %153 = sbr.rel (%p151) target = $region16
        $region15: #{up_conv_forward.2} parent=11 // pred_region
          _
        $region16: #{up_conv_forward.2} parent=11 // pred_fallthru
          _
      $region12: #{up_conv_forward.2} parent=5 // pred_fallthru
        _
      %p154 = scmp.lt.s32.totalorder %s11, 2
      // Predicated region
      $region17: #{up_conv_forward.2} parent=5 // pred_check
        %p155 = pneg %p154
      $region18: #{up_conv_forward.2} parent=5 // pred_check_branch
        %157 = sbr.rel (%p155) target = $region20
      $region19: #{up_conv_forward.2} parent=5 // pred_region
        // Predicated region
        $region21: #{up_conv_forward.2} parent=19 // pred_check
          %p158 = pneg %p52
        $region22: #{up_conv_forward.2} parent=19 // pred_check_branch
          %160 = sbr.rel (%p158) target = $region24
        $region23: #{up_conv_forward.2} parent=19 // pred_region
          %s161 = sand.u32 %s42, 1
          %s162 = sand.u32 %s42, 1
          %s163 = smul.addr %s162, 256
          %s164 = scalar_lea.vmem [#allocation2], %s163
          %s165 = smul.u32 4, %s11
          %s166 = smul.addr %s165, 4
          %s167 = scalar_lea.vmem %s1, %s166
          // Predicated region
          $region25: #{up_conv_forward.2} parent=23 // pred_check
            _
          $region26: #{up_conv_forward.2} parent=23 // pred_check_branch
            %169 = sbr.rel (0) target = $region28
          $region27: #{up_conv_forward.2} parent=23 // pred_region
            // Predicated region
            $region29: #{up_conv_forward.2} parent=27 // pred_check
              _
            $region30: #{up_conv_forward.2} parent=27 // pred_check_branch
              %171 = sbr.rel (0) target = $region32
            $region31: #{up_conv_forward.2} parent=27 // pred_region
              loop: start=0, step=1, limit=1
              $region33: #{up_conv_forward.2} parent=31 // loop_pre_header
                _
              $region34: #{up_conv_forward.2} parent=31 // loop_header
                %s173 = sphi 0, %s177
                %p174 = scmp.ge.s32.totalorder %s173, 1
                %s178 = sphi %s167, %s167
                %s179 = sphi %s164, %s164
              $region35: #{up_conv_forward.2} parent=31 // loop_header_branch
                %176 = sbr.rel (%p174) target = $region39
              $region36: #{up_conv_forward.2} parent=31 // loop_body
                %v180 = vld [vmem:[%s178] sm:$0xff]
                %181 = vst [vmem:[%s179] sm:$0xff] %v180
                %v182 = vld [vmem:[%s178 + $0x8] sm:$0xff]
                %183 = vst [vmem:[%s179 + $0x8] sm:$0xff] %v182
                %v184 = vld [vmem:[%s178 + $0x20] sm:$0xff]
                %185 = vst [vmem:[%s179 + $0x10] sm:$0xff] %v184
                %v186 = vld [vmem:[%s178 + $0x28] sm:$0xff]
                %187 = vst [vmem:[%s179 + $0x18] sm:$0xff] %v186
                %v188 = vld [vmem:[%s178 + $0x40] sm:$0xff]
                %189 = vst [vmem:[%s179 + $0x20] sm:$0xff] %v188
                %v190 = vld [vmem:[%s178 + $0x48] sm:$0xff]
                %191 = vst [vmem:[%s179 + $0x28] sm:$0xff] %v190
                %v192 = vld [vmem:[%s178 + $0x60] sm:$0xff]
                %193 = vst [vmem:[%s179 + $0x30] sm:$0xff] %v192
                %v194 = vld [vmem:[%s178 + $0x68] sm:$0xff]
                %195 = vst [vmem:[%s179 + $0x38] sm:$0xff] %v194
                %v196 = vld [vmem:[%s178 + $0x80] sm:$0xff]
                %197 = vst [vmem:[%s179 + $0x40] sm:$0xff] %v196
                %v198 = vld [vmem:[%s178 + $0x88] sm:$0xff]
                %199 = vst [vmem:[%s179 + $0x48] sm:$0xff] %v198
                %v200 = vld [vmem:[%s178 + $0xa0] sm:$0xff]
                %201 = vst [vmem:[%s179 + $0x50] sm:$0xff] %v200
                %v202 = vld [vmem:[%s178 + $0xa8] sm:$0xff]
                %203 = vst [vmem:[%s179 + $0x58] sm:$0xff] %v202
                %v204 = vld [vmem:[%s178 + $0xc0] sm:$0xff]
                %205 = vst [vmem:[%s179 + $0x60] sm:$0xff] %v204
                %v206 = vld [vmem:[%s178 + $0xc8] sm:$0xff]
                %207 = vst [vmem:[%s179 + $0x68] sm:$0xff] %v206
                %v208 = vld [vmem:[%s178 + $0xe0] sm:$0xff]
                %209 = vst [vmem:[%s179 + $0x70] sm:$0xff] %v208
                %v210 = vld [vmem:[%s178 + $0xe8] sm:$0xff]
                %211 = vst [vmem:[%s179 + $0x78] sm:$0xff] %v210
                %v212 = vld [vmem:[%s178 + $0x100] sm:$0xff]
                %213 = vst [vmem:[%s179 + $0x80] sm:$0xff] %v212
                %v214 = vld [vmem:[%s178 + $0x108] sm:$0xff]
                %215 = vst [vmem:[%s179 + $0x88] sm:$0xff] %v214
                %v216 = vld [vmem:[%s178 + $0x120] sm:$0xff]
                %217 = vst [vmem:[%s179 + $0x90] sm:$0xff] %v216
                %v218 = vld [vmem:[%s178 + $0x128] sm:$0xff]
                %219 = vst [vmem:[%s179 + $0x98] sm:$0xff] %v218
                %v220 = vld [vmem:[%s178 + $0x140] sm:$0xff]
                %221 = vst [vmem:[%s179 + $0xa0] sm:$0xff] %v220
                %v222 = vld [vmem:[%s178 + $0x148] sm:$0xff]
                %223 = vst [vmem:[%s179 + $0xa8] sm:$0xff] %v222
                %v224 = vld [vmem:[%s178 + $0x160] sm:$0xff]
                %225 = vst [vmem:[%s179 + $0xb0] sm:$0xff] %v224
                %v226 = vld [vmem:[%s178 + $0x168] sm:$0xff]
                %227 = vst [vmem:[%s179 + $0xb8] sm:$0xff] %v226
                %v228 = vld [vmem:[%s178 + $0x180] sm:$0xff]
                %229 = vst [vmem:[%s179 + $0xc0] sm:$0xff] %v228
                %v230 = vld [vmem:[%s178 + $0x188] sm:$0xff]
                %231 = vst [vmem:[%s179 + $0xc8] sm:$0xff] %v230
                %v232 = vld [vmem:[%s178 + $0x1a0] sm:$0xff]
                %233 = vst [vmem:[%s179 + $0xd0] sm:$0xff] %v232
                %v234 = vld [vmem:[%s178 + $0x1a8] sm:$0xff]
                %235 = vst [vmem:[%s179 + $0xd8] sm:$0xff] %v234
                %v236 = vld [vmem:[%s178 + $0x1c0] sm:$0xff]
                %237 = vst [vmem:[%s179 + $0xe0] sm:$0xff] %v236
                %v238 = vld [vmem:[%s178 + $0x1c8] sm:$0xff]
                %239 = vst [vmem:[%s179 + $0xe8] sm:$0xff] %v238
                %v240 = vld [vmem:[%s178 + $0x1e0] sm:$0xff]
                %241 = vst [vmem:[%s179 + $0xf0] sm:$0xff] %v240
                %v242 = vld [vmem:[%s178 + $0x1e8] sm:$0xff]
                %243 = vst [vmem:[%s179 + $0xf8] sm:$0xff] %v242
              $region37: #{up_conv_forward.2} parent=31 // loop_footer
                %s177 = sadd.s32 1, %s173
              $region38: #{up_conv_forward.2} parent=31 // loop_footer_branch
                %172 = sbr.rel target = $region34
              $region39: #{up_conv_forward.2} parent=31 // loop_exit
                _
            $region32: #{up_conv_forward.2} parent=27 // pred_fallthru
              _
            // Predicated region
            $region40: #{up_conv_forward.2} parent=27 // pred_check
              _
            $region41: #{up_conv_forward.2} parent=27 // pred_check_branch
              %245 = sbr.rel target = $region43
            $region42: #{up_conv_forward.2} parent=27 // pred_region
              _
            $region43: #{up_conv_forward.2} parent=27 // pred_fallthru
              _
          $region28: #{up_conv_forward.2} parent=23 // pred_fallthru
            _
          %246 = vnop
        $region24: #{up_conv_forward.2} parent=19 // pred_fallthru
          _
      $region20: #{up_conv_forward.2} parent=5 // pred_fallthru
        _
      %p247 = scmp.le.s32.totalorder 1, %s11
      %p248 = scmp.lt.s32.totalorder %s11, 3
      %p249 = pnand %p247, %p248
      %p250 = pneg %p249
      // Predicated region
      $region44: #{up_conv_forward.2} parent=5 // pred_check
        _
      $region45: #{up_conv_forward.2} parent=5 // pred_check_branch
        %252 = sbr.rel (%p249) target = $region47
      $region46: #{up_conv_forward.2} parent=5 // pred_region
        %s253 = ssub.s32 %s11, 1
        %s254 = sand.u32 %s45, 1
        %s255 = sand.u32 %s45, 1
        %s256 = smul.addr %s255, 256
        %s257 = scalar_lea.vmem [#allocation2], %s256
        // Predicated region
        $region48: #{up_conv_forward.2} parent=46 // pred_check
          %p258 = pneg %p58
        $region49: #{up_conv_forward.2} parent=46 // pred_check_branch
          %260 = sbr.rel (%p258) target = $region51
        $region50: #{up_conv_forward.2} parent=46 // pred_region
          _
        $region51: #{up_conv_forward.2} parent=46 // pred_fallthru
          _
        %p261 = pneg %p32
        %p262 = pneg %p29
        %s263 = sand.u32 %s45, 1
        %s264 = sand.u32 %s45, 1
        %s265 = smul.addr %s264, 256
        %s266 = scalar_lea.vmem [#allocation2], %s265
        %p267 = pneg %p58
        %p268 = pneg %p55
        %p269 = pneg %p84
        %p270 = pneg %p81
        %s271 = smul.u32 4, %s16
        %p272 = scmp.lt.s32.totalorder %s271, 7
        %s273 = scalar_select %p272, %s271, 7
        %s274 = smul.addr %s273, 4
        %s275 = scalar_lea.vmem %s2, %s274
        %p276 = pneg %p110
        %p277 = pneg %p107
        %p278 = scmp.lt.s32.totalorder %s16, 1
        %s279 = scalar_select %p278, %s16, 1
        %s280 = smul.addr %s279, 8
        %s281 = scalar_lea.vmem %s3, %s280
        %p282 = pneg %p136
        %p283 = pneg %p133
        %p284 = scmp.lt.s32.totalorder %s16, 1
        %s285 = scalar_select %p284, %s16, 1
        %s286 = smul.addr %s285, 8
        %s287 = scalar_lea.vmem %s4, %s286
        %s288 = smul.u32 4, %s16
        %s289 = smul.u32 4, %s16
        %p290 = scmp.lt.s32.totalorder %s289, 7
        %s291 = scalar_select %p290, %s289, 7
        %s292 = smul.addr %s291, 4
        %s293 = scalar_lea.vmem %s2, %s292
        %s294 = smul.u32 4, %s16
        %p295 = scmp.lt.s32.totalorder %s16, 1
        %s296 = scalar_select %p295, %s16, 1
        %s297 = smul.addr %s296, 8
        %s298 = scalar_lea.vmem %s3, %s297
        %p299 = scmp.lt.s32.totalorder %s16, 1
        %s300 = scalar_select %p299, %s16, 1
        %s301 = smul.addr %s300, 8
        %s302 = scalar_lea.vmem %s4, %s301
        %v304 = vld [vmem:[%s0] sm:$0xf]
        %v305 = vld [vmem:[%s257] sm:$0xff]
        %v306 = vld [vmem:[%s257 + $0x8] sm:$0xff]
        %v307 = vld [vmem:[%s257 + $0x10] sm:$0xff]
        %v308 = vld [vmem:[%s257 + $0x18] sm:$0xff]
        %v309 = vld [vmem:[%s257 + $0x20] sm:$0xff]
        %v310 = vld [vmem:[%s257 + $0x28] sm:$0xff]
        %v311 = vld [vmem:[%s257 + $0x30] sm:$0xff]
        %v312 = vld [vmem:[%s257 + $0x38] sm:$0xff]
        %v313 = vld [vmem:[%s257 + $0x40] sm:$0xff]
        %v314 = vld [vmem:[%s257 + $0x48] sm:$0xff]
        %v315 = vld [vmem:[%s257 + $0x50] sm:$0xff]
        %v316 = vld [vmem:[%s257 + $0x58] sm:$0xff]
        %v317 = vld [vmem:[%s257 + $0x60] sm:$0xff]
        %v318 = vld [vmem:[%s257 + $0x68] sm:$0xff]
        %v319 = vld [vmem:[%s257 + $0x70] sm:$0xff]
        %v320 = vld [vmem:[%s257 + $0x78] sm:$0xff]
        %v321 = vld [vmem:[%s257 + $0x80] sm:$0xff]
        %v322 = vld [vmem:[%s257 + $0x88] sm:$0xff]
        %v323 = vld [vmem:[%s257 + $0x90] sm:$0xff]
        %v324 = vld [vmem:[%s257 + $0x98] sm:$0xff]
        %v325 = vld [vmem:[%s257 + $0xa0] sm:$0xff]
        %v326 = vld [vmem:[%s257 + $0xa8] sm:$0xff]
        %v327 = vld [vmem:[%s257 + $0xb0] sm:$0xff]
        %v328 = vld [vmem:[%s257 + $0xb8] sm:$0xff]
        %v329 = vld [vmem:[%s257 + $0xc0] sm:$0xff]
        %v330 = vld [vmem:[%s257 + $0xc8] sm:$0xff]
        %v331 = vld [vmem:[%s257 + $0xd0] sm:$0xff]
        %v332 = vld [vmem:[%s257 + $0xd8] sm:$0xff]
        %v333 = vld [vmem:[%s257 + $0xe0] sm:$0xff]
        %v334 = vld [vmem:[%s257 + $0xe8] sm:$0xff]
        %v335 = vld [vmem:[%s257 + $0xf0] sm:$0xff]
        %v336 = vld [vmem:[%s257 + $0xf8] sm:$0xff]
        %v369 = vunpack.c.l.b16 %v305
        %v370 = vunpack.c.h.b16 %v305
        %v371 = vunpack.c.l.b16 %v306
        %v372 = vunpack.c.h.b16 %v306
        %v373 = vunpack.c.l.b16 %v307
        %v374 = vunpack.c.h.b16 %v307
        %v375 = vunpack.c.l.b16 %v308
        %v376 = vunpack.c.h.b16 %v308
        %v377 = vunpack.c.l.b16 %v309
        %v378 = vunpack.c.h.b16 %v309
        %v379 = vunpack.c.l.b16 %v310
        %v380 = vunpack.c.h.b16 %v310
        %v381 = vunpack.c.l.b16 %v311
        %v382 = vunpack.c.h.b16 %v311
        %v383 = vunpack.c.l.b16 %v312
        %v384 = vunpack.c.h.b16 %v312
        %v385 = vunpack.c.l.b16 %v313
        %v386 = vunpack.c.h.b16 %v313
        %v387 = vunpack.c.l.b16 %v314
        %v388 = vunpack.c.h.b16 %v314
        %v389 = vunpack.c.l.b16 %v315
        %v390 = vunpack.c.h.b16 %v315
        %v391 = vunpack.c.l.b16 %v316
        %v392 = vunpack.c.h.b16 %v316
        %v393 = vunpack.c.l.b16 %v317
        %v394 = vunpack.c.h.b16 %v317
        %v395 = vunpack.c.l.b16 %v318
        %v396 = vunpack.c.h.b16 %v318
        %v397 = vunpack.c.l.b16 %v319
        %v398 = vunpack.c.h.b16 %v319
        %v399 = vunpack.c.l.b16 %v320
        %v400 = vunpack.c.h.b16 %v320
        %v401 = vunpack.c.l.b16 %v321
        %v402 = vunpack.c.h.b16 %v321
        %v403 = vunpack.c.l.b16 %v322
        %v404 = vunpack.c.h.b16 %v322
        %v405 = vunpack.c.l.b16 %v323
        %v406 = vunpack.c.h.b16 %v323
        %v407 = vunpack.c.l.b16 %v324
        %v408 = vunpack.c.h.b16 %v324
        %v409 = vunpack.c.l.b16 %v325
        %v410 = vunpack.c.h.b16 %v325
        %v411 = vunpack.c.l.b16 %v326
        %v412 = vunpack.c.h.b16 %v326
        %v413 = vunpack.c.l.b16 %v327
        %v414 = vunpack.c.h.b16 %v327
        %v415 = vunpack.c.l.b16 %v328
        %v416 = vunpack.c.h.b16 %v328
        %v417 = vunpack.c.l.b16 %v329
        %v418 = vunpack.c.h.b16 %v329
        %v419 = vunpack.c.l.b16 %v330
        %v420 = vunpack.c.h.b16 %v330
        %v421 = vunpack.c.l.b16 %v331
        %v422 = vunpack.c.h.b16 %v331
        %v423 = vunpack.c.l.b16 %v332
        %v424 = vunpack.c.h.b16 %v332
        %v425 = vunpack.c.l.b16 %v333
        %v426 = vunpack.c.h.b16 %v333
        %v427 = vunpack.c.l.b16 %v334
        %v428 = vunpack.c.h.b16 %v334
        %v429 = vunpack.c.l.b16 %v335
        %v430 = vunpack.c.h.b16 %v335
        %v431 = vunpack.c.l.b16 %v336
        %v432 = vunpack.c.h.b16 %v336
        %v433 = vpack.c.b16 %v373, %v369
        %v434 = vpack.c.b16 %v374, %v370
        %v435 = vpack.c.b16 %v375, %v371
        %v436 = vpack.c.b16 %v376, %v372
        %v437 = vpack.c.b16 %v381, %v377
        %v438 = vpack.c.b16 %v382, %v378
        %v439 = vpack.c.b16 %v383, %v379
        %v440 = vpack.c.b16 %v384, %v380
        %v441 = vpack.c.b16 %v389, %v385
        %v442 = vpack.c.b16 %v390, %v386
        %v443 = vpack.c.b16 %v391, %v387
        %v444 = vpack.c.b16 %v392, %v388
        %v445 = vpack.c.b16 %v397, %v393
        %v446 = vpack.c.b16 %v398, %v394
        %v447 = vpack.c.b16 %v399, %v395
        %v448 = vpack.c.b16 %v400, %v396
        %v449 = vpack.c.b16 %v405, %v401
        %v450 = vpack.c.b16 %v406, %v402
        %v451 = vpack.c.b16 %v407, %v403
        %v452 = vpack.c.b16 %v408, %v404
        %v453 = vpack.c.b16 %v413, %v409
        %v454 = vpack.c.b16 %v414, %v410
        %v455 = vpack.c.b16 %v415, %v411
        %v456 = vpack.c.b16 %v416, %v412
        %v457 = vpack.c.b16 %v421, %v417
        %v458 = vpack.c.b16 %v422, %v418
        %v459 = vpack.c.b16 %v423, %v419
        %v460 = vpack.c.b16 %v424, %v420
        %v461 = vpack.c.b16 %v429, %v425
        %v462 = vpack.c.b16 %v430, %v426
        %v463 = vpack.c.b16 %v431, %v427
        %v464 = vpack.c.b16 %v432, %v428
        %497 = vmatprep.subr.bf16.mxu0 %v434
        %498 = vmatpush1.bf16.msra.mxu0 %v433
        %499 = vmatprep.subr.bf16.mxu0 %v438
        %500 = vmatpush1.bf16.msra.mxu0 %v437
        %501 = vmatprep.subr.bf16.mxu0 %v442
        %502 = vmatpush1.bf16.msra.mxu0 %v441
        %503 = vmatprep.subr.bf16.mxu0 %v446
        %504 = vmatpush1.bf16.msra.mxu0 %v445
        %505 = vmatprep.subr.bf16.mxu0 %v450
        %506 = vmatpush1.bf16.msra.mxu0 %v449
        %507 = vmatprep.subr.bf16.mxu0 %v454
        %508 = vmatpush1.bf16.msra.mxu0 %v453
        %509 = vmatprep.subr.bf16.mxu0 %v458
        %510 = vmatpush1.bf16.msra.mxu0 %v457
        %511 = vmatprep.subr.bf16.mxu0 %v462
        %512 = vmatpush1.bf16.msra.mxu0 %v461
        %513 = vmatprep.subr.bf16.mxu0 0
        %514 = vmatpush1.bf16.msra.mxu0 0
        %515 = vmatprep.subr.bf16.mxu0 0
        %516 = vmatpush1.bf16.msra.mxu0 0
        %517 = vmatprep.subr.bf16.mxu0 0
        %518 = vmatpush1.bf16.msra.mxu0 0
        %519 = vmatprep.subr.bf16.mxu0 0
        %520 = vmatpush1.bf16.msra.mxu0 0
        %521 = vmatprep.subr.bf16.mxu0 0
        %522 = vmatpush1.bf16.msra.mxu0 0
        %523 = vmatprep.subr.bf16.mxu0 0
        %524 = vmatpush1.bf16.msra.mxu0 0
        %525 = vmatprep.subr.bf16.mxu0 0
        %526 = vmatpush1.bf16.msra.mxu0 0
        %527 = vmatprep.subr.bf16.mxu0 0
        %528 = vmatpush1.bf16.msra.mxu0 0
        %529 = vmatprep.mubr.bf16.mxu0 0
        %530 = vmatmul.mubr.bf16.gmra.mrb[0].mxu0 %v304
        %v531 = vpop.f32.mrb[0].mxu0
        %v532 = vadd.f32 0.0, %v531
        %v533 = vpop.f32.mrb[0].mxu0
        %v534 = vadd.f32 0.0, %v533
        %v535 = vpop.f32.mrb[0].mxu0
        %v536 = vpop.f32.mrb[0].mxu0
        %537 = vdwg.mxu0
        %538 = vmatprep.subr.bf16.mxu0 %v436
        %539 = vmatpush1.bf16.msra.mxu0 %v435
        %540 = vmatprep.subr.bf16.mxu0 %v440
        %541 = vmatpush1.bf16.msra.mxu0 %v439
        %542 = vmatprep.subr.bf16.mxu0 %v444
        %543 = vmatpush1.bf16.msra.mxu0 %v443
        %544 = vmatprep.subr.bf16.mxu0 %v448
        %545 = vmatpush1.bf16.msra.mxu0 %v447
        %546 = vmatprep.subr.bf16.mxu0 %v452
        %547 = vmatpush1.bf16.msra.mxu0 %v451
        %548 = vmatprep.subr.bf16.mxu0 %v456
        %549 = vmatpush1.bf16.msra.mxu0 %v455
        %550 = vmatprep.subr.bf16.mxu0 %v460
        %551 = vmatpush1.bf16.msra.mxu0 %v459
        %552 = vmatprep.subr.bf16.mxu0 %v464
        %553 = vmatpush1.bf16.msra.mxu0 %v463
        %554 = vmatprep.subr.bf16.mxu0 0
        %555 = vmatpush1.bf16.msra.mxu0 0
        %556 = vmatprep.subr.bf16.mxu0 0
        %557 = vmatpush1.bf16.msra.mxu0 0
        %558 = vmatprep.subr.bf16.mxu0 0
        %559 = vmatpush1.bf16.msra.mxu0 0
        %560 = vmatprep.subr.bf16.mxu0 0
        %561 = vmatpush1.bf16.msra.mxu0 0
        %562 = vmatprep.subr.bf16.mxu0 0
        %563 = vmatpush1.bf16.msra.mxu0 0
        %564 = vmatprep.subr.bf16.mxu0 0
        %565 = vmatpush1.bf16.msra.mxu0 0
        %566 = vmatprep.subr.bf16.mxu0 0
        %567 = vmatpush1.bf16.msra.mxu0 0
        %568 = vmatprep.subr.bf16.mxu0 0
        %569 = vmatpush1.bf16.msra.mxu0 0
        %570 = vmatprep.mubr.bf16.mxu0 0
        %571 = vmatmul.mubr.bf16.gmra.mrb[0].mxu0 %v304
        %v572 = vpop.f32.mrb[0].mxu0
        %v573 = vadd.f32 0.0, %v572
        %v574 = vpop.f32.mrb[0].mxu0
        %v575 = vadd.f32 0.0, %v574
        %v576 = vpop.f32.mrb[0].mxu0
        %v577 = vpop.f32.mrb[0].mxu0
        %578 = vdwg.mxu0
        %v579 = vpack.c.bf16 %v532, %v532
        %v580 = vpack.c.bf16 %v534, %v534
        %v581 = vpack.c.bf16 %v573, %v573
        %v582 = vpack.c.bf16 %v575, %v575
        %v587 = vunpack.c.l.b16 %v579
        %v588 = vunpack.c.l.b16 %v580
        %v589 = vunpack.c.l.b16 %v581
        %v590 = vunpack.c.l.b16 %v582
        %v591 = vpack.c.b16 %v588, %v587
        %v592 = vpack.c.b16 %v590, %v589
        %595 = vst [vmem:[%s293] sm:$0xff] %v591
        %596 = vst [vmem:[%s293 + $0x8] sm:$0xff] %v592
        %v597 = vadd.f32 %v532, %v534
        %v598 = vadd.f32 %v597, %v573
        %v599 = vadd.f32 %v598, %v575
        %600 = vadd.xlane.f32.xlu0 %v599
        %v601 = vpop.xlane.xlu0 %600
        %vm602 = vcmask 7168
        %603 = vst.msk [vmem:[%s298] sm:$0xff] %vm602, %v601
        %v604 = vmul.f32 %v532, %v532
        %v605 = vmul.f32 %v534, %v534
        %v606 = vmul.f32 %v573, %v573
        %v607 = vmul.f32 %v575, %v575
        %v608 = vadd.f32 %v604, %v605
        %v609 = vadd.f32 %v608, %v606
        %v610 = vadd.f32 %v609, %v607
        %611 = vadd.xlane.f32.xlu0 %v610
        %v612 = vpop.xlane.xlu0 %611
        %613 = vst.msk [vmem:[%s302] sm:$0xff] %vm602, %v612
        %s614 = smul.u32 4, %s16
        %p615 = scmp.lt.s32.totalorder %s614, 7
        %s616 = scalar_select %p615, %s614, 7
        %s617 = smul.addr %s616, 4
        %s618 = scalar_lea.vmem %s2, %s617
        %p619 = scmp.lt.s32.totalorder %s16, 1
        %s620 = scalar_select %p619, %s16, 1
        %s621 = smul.addr %s620, 8
        %s622 = scalar_lea.vmem %s3, %s621
        %p623 = scmp.lt.s32.totalorder %s16, 1
        %s624 = scalar_select %p623, %s16, 1
        %s625 = smul.addr %s624, 8
        %s626 = scalar_lea.vmem %s4, %s625
        // Predicated region
        $region52: #{up_conv_forward.2} parent=46 // pred_check
          %p627 = pneg %p81
        $region53: #{up_conv_forward.2} parent=46 // pred_check_branch
          %629 = sbr.rel (%p627) target = $region55
        $region54: #{up_conv_forward.2} parent=46 // pred_region
          %s630 = smul.u32 4, %s16
        $region55: #{up_conv_forward.2} parent=46 // pred_fallthru
          _
        // Predicated region
        $region56: #{up_conv_forward.2} parent=46 // pred_check
          %p631 = pneg %p107
        $region57: #{up_conv_forward.2} parent=46 // pred_check_branch
          %633 = sbr.rel (%p631) target = $region59
        $region58: #{up_conv_forward.2} parent=46 // pred_region
          _
        $region59: #{up_conv_forward.2} parent=46 // pred_fallthru
          _
        // Predicated region
        $region60: #{up_conv_forward.2} parent=46 // pred_check
          %p634 = pneg %p133
        $region61: #{up_conv_forward.2} parent=46 // pred_check_branch
          %636 = sbr.rel (%p634) target = $region63
        $region62: #{up_conv_forward.2} parent=46 // pred_region
          _
        $region63: #{up_conv_forward.2} parent=46 // pred_fallthru
          _
      $region47: #{up_conv_forward.2} parent=5 // pred_fallthru
        _
      %p637 = scmp.le.s32.totalorder 2, %s11
      // Predicated region
      $region64: #{up_conv_forward.2} parent=5 // pred_check
        %p638 = pneg %p637
      $region65: #{up_conv_forward.2} parent=5 // pred_check_branch
        %640 = sbr.rel (%p638) target = $region67
      $region66: #{up_conv_forward.2} parent=5 // pred_region
        %s641 = ssub.s32 %s11, 2
        // Predicated region
        $region68: #{up_conv_forward.2} parent=66 // pred_check
          %p642 = pneg %p87
        $region69: #{up_conv_forward.2} parent=66 // pred_check_branch
          %644 = sbr.rel (%p642) target = $region71
        $region70: #{up_conv_forward.2} parent=66 // pred_region
          %s645 = smul.u32 4, %s17
          %p646 = scmp.lt.s32.totalorder %s645, 7
          %s647 = scalar_select %p646, %s645, 7
          %s648 = smul.addr %s647, 4
          %s649 = scalar_lea.vmem %s2, %s648
        $region71: #{up_conv_forward.2} parent=66 // pred_fallthru
          _
        // Predicated region
        $region72: #{up_conv_forward.2} parent=66 // pred_check
          %p650 = pneg %p113
        $region73: #{up_conv_forward.2} parent=66 // pred_check_branch
          %652 = sbr.rel (%p650) target = $region75
        $region74: #{up_conv_forward.2} parent=66 // pred_region
          %p653 = scmp.lt.s32.totalorder %s17, 1
          %s654 = scalar_select %p653, %s17, 1
          %s655 = smul.addr %s654, 8
          %s656 = scalar_lea.vmem %s3, %s655
        $region75: #{up_conv_forward.2} parent=66 // pred_fallthru
          _
        // Predicated region
        $region76: #{up_conv_forward.2} parent=66 // pred_check
          %p657 = pneg %p139
        $region77: #{up_conv_forward.2} parent=66 // pred_check_branch
          %659 = sbr.rel (%p657) target = $region79
        $region78: #{up_conv_forward.2} parent=66 // pred_region
          %p660 = scmp.lt.s32.totalorder %s17, 1
          %s661 = scalar_select %p660, %s17, 1
          %s662 = smul.addr %s661, 8
          %s663 = scalar_lea.vmem %s4, %s662
        $region79: #{up_conv_forward.2} parent=66 // pred_fallthru
          _
      $region67: #{up_conv_forward.2} parent=5 // pred_fallthru
        _
    $region6: #{up_conv_forward.2} parent=1 // loop_footer
      %s15 = sadd.s32 1, %s11
    $region7: #{up_conv_forward.2} parent=1 // loop_footer_branch
      %10 = sbr.rel target = $region3
    $region8: #{up_conv_forward.2} parent=1 // loop_exit
      _

// kernel: up_conv_forward.3
$region0: #{up_conv_forward.3}
  #allocation0 [shape = 'u32[]', space=smem, size = 0x4, offset = 0x4, fixed_abs, tag = 'smem constant byte address 0x4 - core index']
  #allocation1 [shape = 'u32[144,128]{1,0:T(1,128)}', space=vmem, size = 0x12000, scoped, tag = 'internal scratch']
  %s0 = inlined_call_operand.vmem [shape: bf16[8,1024], index: 0, kind: input, shape index: {}]
  %s1 = inlined_call_operand.vmem [shape: f32[8,1], index: 1, kind: input, shape index: {}]
  %s2 = inlined_call_operand.vmem [shape: f32[8,1], index: 2, kind: input, shape index: {}]
  %s3 = inlined_call_operand.vmem [shape: f32[8,1024], index: 3, kind: output, shape index: {}]
  %s4 = sld [smem:[#allocation0]]
  $region45: #{up_conv_forward.3} parent=0
    _
  %s6 = ssub.s32 1, %s4
  %s7 = scalar_select 0, %s6, %s4
  loop: start=0, step=1, limit=4
  $region2: #{up_conv_forward.3} parent=0 // loop_pre_header
    _
  $region3: #{up_conv_forward.3} parent=0 // loop_header
    %s9 = sphi 0, %s13
    %p10 = scmp.ge.s32.totalorder %s9, 4
    %s19 = sphi 0, %s21
    %s22 = sphi 0, %s19
    %s23 = sphi 0, %s22
    %s39 = sphi 0, %s23
    %s43 = sphi 0, %s43
    %s45 = sphi 0, %s43
    %s46 = sphi 0, %s45
    %s60 = sphi 0, %s46
    %s64 = sphi 0, %s64
    %s66 = sphi 0, %s64
    %s67 = sphi 0, %s66
    %s81 = sphi 0, %s67
    %s87 = sphi 0, %s89
    %s90 = sphi 0, %s87
    %s91 = sphi 0, %s90
    %s107 = sphi 0, %s91
  $region4: #{up_conv_forward.3} parent=0 // loop_header_branch
    %12 = sbr.rel (%p10) target = $region8
  $region5: #{up_conv_forward.3} parent=0 // loop_body
    %s14 = ssub.s32 %s9, 1
    %s15 = ssub.s32 %s9, 2
    %s16 = sadd.s32 %s9, 1
    %s17 = ssub.s32 %s9, %s16
    %p18 = scmp.eq.s32.totalorder %s17, 0
    %s20 = sadd.s32 %s19, 1
    %s21 = scalar_select %p18, %s19, %s20
    %p24 = pneg %p18
    %p25 = scmp.eq.s32.totalorder %s9, 1
    %p26 = por %p24, %p25
    %p27 = scmp.ne.s32.totalorder %s19, %s22
    %p28 = scmp.eq.s32.totalorder %s9, 0
    %p29 = por %p27, %p28
    %p30 = scmp.ne.s32.totalorder %s19, %s22
    %p31 = scmp.eq.s32.totalorder %s14, 1
    %p32 = por %p30, %p31
    %p33 = scmp.ne.s32.totalorder %s22, %s23
    %p34 = scmp.eq.s32.totalorder %s14, 0
    %p35 = por %p33, %p34
    %p36 = scmp.ne.s32.totalorder %s22, %s23
    %p37 = scmp.eq.s32.totalorder %s15, 1
    %p38 = por %p36, %p37
    %p40 = scmp.ne.s32.totalorder %s23, %s39
    %p41 = scmp.eq.s32.totalorder %s15, 0
    %p42 = por %p40, %p41
    %s44 = sadd.s32 %s43, 1
    %p47 = scmp.eq.s32.totalorder %s9, 1
    %p48 = scmp.ne.s32.totalorder %s43, %s45
    %p49 = scmp.eq.s32.totalorder %s9, 0
    %p50 = por %p48, %p49
    %p51 = scmp.ne.s32.totalorder %s43, %s45
    %p52 = scmp.eq.s32.totalorder %s14, 1
    %p53 = por %p51, %p52
    %p54 = scmp.ne.s32.totalorder %s45, %s46
    %p55 = scmp.eq.s32.totalorder %s14, 0
    %p56 = por %p54, %p55
    %p57 = scmp.ne.s32.totalorder %s45, %s46
    %p58 = scmp.eq.s32.totalorder %s15, 1
    %p59 = por %p57, %p58
    %p61 = scmp.ne.s32.totalorder %s46, %s60
    %p62 = scmp.eq.s32.totalorder %s15, 0
    %p63 = por %p61, %p62
    %s65 = sadd.s32 %s64, 1
    %p68 = scmp.eq.s32.totalorder %s9, 1
    %p69 = scmp.ne.s32.totalorder %s64, %s66
    %p70 = scmp.eq.s32.totalorder %s9, 0
    %p71 = por %p69, %p70
    %p72 = scmp.ne.s32.totalorder %s64, %s66
    %p73 = scmp.eq.s32.totalorder %s14, 1
    %p74 = por %p72, %p73
    %p75 = scmp.ne.s32.totalorder %s66, %s67
    %p76 = scmp.eq.s32.totalorder %s14, 0
    %p77 = por %p75, %p76
    %p78 = scmp.ne.s32.totalorder %s66, %s67
    %p79 = scmp.eq.s32.totalorder %s15, 1
    %p80 = por %p78, %p79
    %p82 = scmp.ne.s32.totalorder %s67, %s81
    %p83 = scmp.eq.s32.totalorder %s15, 0
    %p84 = por %p82, %p83
    %s85 = ssub.s32 %s9, %s16
    %p86 = scmp.eq.s32.totalorder %s85, 0
    %s88 = sadd.s32 %s87, 1
    %s89 = scalar_select %p86, %s87, %s88
    %p92 = pneg %p86
    %p93 = scmp.eq.s32.totalorder %s9, 1
    %p94 = por %p92, %p93
    %p95 = scmp.ne.s32.totalorder %s87, %s90
    %p96 = scmp.eq.s32.totalorder %s9, 0
    %p97 = por %p95, %p96
    %p98 = scmp.ne.s32.totalorder %s87, %s90
    %p99 = scmp.eq.s32.totalorder %s14, 1
    %p100 = por %p98, %p99
    %p101 = scmp.ne.s32.totalorder %s90, %s91
    %p102 = scmp.eq.s32.totalorder %s14, 0
    %p103 = por %p101, %p102
    %p104 = scmp.ne.s32.totalorder %s90, %s91
    %p105 = scmp.eq.s32.totalorder %s15, 1
    %p106 = por %p104, %p105
    %p108 = scmp.ne.s32.totalorder %s91, %s107
    %p109 = scmp.eq.s32.totalorder %s15, 0
    %p110 = por %p108, %p109
    %p111 = scmp.le.s32.totalorder 1, %s9
    %p112 = scmp.lt.s32.totalorder %s9, 3
    %p113 = pnand %p111, %p112
    %p114 = pneg %p113
    // Predicated region
    $region9: #{up_conv_forward.3} parent=5 // pred_check
      _
    $region10: #{up_conv_forward.3} parent=5 // pred_check_branch
      %116 = sbr.rel (%p113) target = $region12
    $region11: #{up_conv_forward.3} parent=5 // pred_region
      %s117 = ssub.s32 %s9, 1
      // Predicated region
      $region13: #{up_conv_forward.3} parent=11 // pred_check
        %p118 = pneg %p56
      $region14: #{up_conv_forward.3} parent=11 // pred_check_branch
        %120 = sbr.rel (%p118) target = $region16
      $region15: #{up_conv_forward.3} parent=11 // pred_region
        _
      $region16: #{up_conv_forward.3} parent=11 // pred_fallthru
        _
      // Predicated region
      $region17: #{up_conv_forward.3} parent=11 // pred_check
        %p121 = pneg %p77
      $region18: #{up_conv_forward.3} parent=11 // pred_check_branch
        %123 = sbr.rel (%p121) target = $region20
      $region19: #{up_conv_forward.3} parent=11 // pred_region
        _
      $region20: #{up_conv_forward.3} parent=11 // pred_fallthru
        _
    $region12: #{up_conv_forward.3} parent=5 // pred_fallthru
      _
    %p124 = scmp.lt.s32.totalorder %s9, 2
    // Predicated region
    $region21: #{up_conv_forward.3} parent=5 // pred_check
      %p125 = pneg %p124
    $region22: #{up_conv_forward.3} parent=5 // pred_check_branch
      %127 = sbr.rel (%p125) target = $region24
    $region23: #{up_conv_forward.3} parent=5 // pred_region
      // Predicated region
      $region25: #{up_conv_forward.3} parent=23 // pred_check
        %p128 = pneg %p29
      $region26: #{up_conv_forward.3} parent=23 // pred_check_branch
        %130 = sbr.rel (%p128) target = $region28
      $region27: #{up_conv_forward.3} parent=23 // pred_region
        %s131 = smul.u32 4, %s9
        %p132 = scmp.lt.s32.totalorder %s131, 7
        %s133 = scalar_select %p132, %s131, 7
        %s134 = smul.addr %s133, 4
        %s135 = scalar_lea.vmem %s0, %s134
        %s136 = smul.u32 4, %s9
      $region28: #{up_conv_forward.3} parent=23 // pred_fallthru
        _
    $region24: #{up_conv_forward.3} parent=5 // pred_fallthru
      _
    %p137 = scmp.le.s32.totalorder 1, %s9
    %p138 = scmp.lt.s32.totalorder %s9, 3
    %p139 = pnand %p137, %p138
    %p140 = pneg %p139
    // Predicated region
    $region29: #{up_conv_forward.3} parent=5 // pred_check
      _
    $region30: #{up_conv_forward.3} parent=5 // pred_check_branch
      %142 = sbr.rel (%p139) target = $region32
    $region31: #{up_conv_forward.3} parent=5 // pred_region
      %s143 = ssub.s32 %s9, 1
      %s144 = smul.u32 4, %s14
      %p145 = scmp.lt.s32.totalorder %s144, 7
      %s146 = scalar_select %p145, %s144, 7
      %s147 = smul.addr %s146, 4
      %s148 = scalar_lea.vmem %s0, %s147
      %p149 = pneg %p35
      %p150 = pneg %p32
      %p151 = pneg %p56
      %p152 = pneg %p53
      %p153 = pneg %p77
      %p154 = pneg %p74
      %p155 = pneg %p103
      %p156 = pneg %p100
      %s157 = smul.u32 4, %s14
      %p158 = scmp.lt.s32.totalorder %s157, 7
      %s159 = scalar_select %p158, %s157, 7
      %s160 = smul.addr %s159, 8
      %s161 = scalar_lea.vmem %s3, %s160
      %s162 = smul.u32 4, %s14
      %p163 = scmp.lt.s32.totalorder %s162, 7
      %s164 = scalar_select %p163, %s162, 7
      %s165 = smul.addr %s164, 4
      %s166 = scalar_lea.vmem %s0, %s165
      %s167 = smul.u32 4, %s14
      %s168 = smul.u32 4, %s14
      %p169 = scmp.lt.s32.totalorder %s168, 7
      %s170 = scalar_select %p169, %s168, 7
      %s171 = smul.addr %s170, 8
      %s172 = scalar_lea.vmem %s3, %s171
      %s173 = smul.u32 4, %s14
      %v174 = vld [vmem:[%s166] sm:$0xff]
      %v175 = vld [vmem:[%s166 + $0x8] sm:$0xff]
      %v176 = vunpack.c.l.bf16 %v174
      %v177 = vunpack.c.h.bf16 %v174
      %v178 = vunpack.c.l.bf16 %v175
      %v179 = vunpack.c.h.bf16 %v175
      %v180 = vld [vmem:[%s1] sm:$0xff]
      %182 = vset.pattern.permute.xlu0 0
      %183 = vperm.xlu0 %182, %v180
      %v184 = vpop.permute.xlu0 %183
      %v186 = vmul.f32 %v176, %v184
      %v187 = vmul.f32 %v177, %v184
      %v188 = vmul.f32 %v178, %v184
      %v189 = vmul.f32 %v179, %v184
      %v190 = vld [vmem:[%s2] sm:$0xff]
      %192 = vset.pattern.permute.xlu0 0
      %193 = vperm.xlu0 %192, %v190
      %v194 = vpop.permute.xlu0 %193
      %v196 = vadd.f32 %v186, %v194
      %v197 = vadd.f32 %v187, %v194
      %v198 = vadd.f32 %v188, %v194
      %v199 = vadd.f32 %v189, %v194
      %v200 = vmax.f32 %v196, 0.0
      %v201 = vmax.f32 %v197, 0.0
      %v202 = vmax.f32 %v198, 0.0
      %v203 = vmax.f32 %v199, 0.0
      %204 = vst [vmem:[%s172] sm:$0xff] %v200
      %205 = vst [vmem:[%s172 + $0x8] sm:$0xff] %v201
      %206 = vst [vmem:[%s172 + $0x10] sm:$0xff] %v202
      %207 = vst [vmem:[%s172 + $0x18] sm:$0xff] %v203
      %s208 = smul.u32 4, %s14
      %p209 = scmp.lt.s32.totalorder %s208, 7
      %s210 = scalar_select %p209, %s208, 7
      %s211 = smul.addr %s210, 8
      %s212 = scalar_lea.vmem %s3, %s211
      // Predicated region
      $region33: #{up_conv_forward.3} parent=31 // pred_check
        %p213 = pneg %p100
      $region34: #{up_conv_forward.3} parent=31 // pred_check_branch
        %215 = sbr.rel (%p213) target = $region36
      $region35: #{up_conv_forward.3} parent=31 // pred_region
        %s216 = smul.u32 4, %s14
      $region36: #{up_conv_forward.3} parent=31 // pred_fallthru
        _
    $region32: #{up_conv_forward.3} parent=5 // pred_fallthru
      _
    %p217 = scmp.le.s32.totalorder 2, %s9
    // Predicated region
    $region37: #{up_conv_forward.3} parent=5 // pred_check
      %p218 = pneg %p217
    $region38: #{up_conv_forward.3} parent=5 // pred_check_branch
      %220 = sbr.rel (%p218) target = $region40
    $region39: #{up_conv_forward.3} parent=5 // pred_region
      %s221 = ssub.s32 %s9, 2
      // Predicated region
      $region41: #{up_conv_forward.3} parent=39 // pred_check
        %p222 = pneg %p106
      $region42: #{up_conv_forward.3} parent=39 // pred_check_branch
        %224 = sbr.rel (%p222) target = $region44
      $region43: #{up_conv_forward.3} parent=39 // pred_region
        %s225 = smul.u32 4, %s15
        %p226 = scmp.lt.s32.totalorder %s225, 7
        %s227 = scalar_select %p226, %s225, 7
        %s228 = smul.addr %s227, 8
        %s229 = scalar_lea.vmem %s3, %s228
      $region44: #{up_conv_forward.3} parent=39 // pred_fallthru
        _
    $region40: #{up_conv_forward.3} parent=5 // pred_fallthru
      _
  $region6: #{up_conv_forward.3} parent=0 // loop_footer
    %s13 = sadd.s32 1, %s9
  $region7: #{up_conv_forward.3} parent=0 // loop_footer_branch
    %8 = sbr.rel target = $region3
  $region8: #{up_conv_forward.3} parent=0 // loop_exit
    _

</llo_original>
